<compile_context>
chip_gen: v5e
topology: v5e:2x2
jax: 0.10.0
libtpu: 0.0.40
codegen_flags: <defaults>
</compile_context>

<pallas_src>
import functools
import math

import jax
import jax.numpy as jnp
from jax import lax
from jax.experimental import pallas as pl
from jax.experimental.pallas import tpu as pltpu


def _mha_kernel(x_ref, wq_ref, wk_ref, wv_ref, wo_ref, bo_ref, out_ref, *,
                num_heads, q_tile, compute_dtype):
    # x_ref : (1, T, D_in)      compute dtype
    # wq/wk/wv_ref : (D_in, D_out), wo_ref : (D_out, D_out)   compute dtype
    # bo_ref : (1, D_out) f32
    # out_ref: (1, q_tile, D_out)
    qi = pl.program_id(1)
    q_start = pl.multiple_of(qi * q_tile, q_tile)

    x_all = x_ref[0]                                  # (T, D_in)
    x_q = x_ref[0, pl.ds(q_start, q_tile), :]         # (TQ, D_in)

    T = x_all.shape[0]
    d_out = wq_ref.shape[1]
    head_dim = d_out // num_heads
    scale = 1.0 / (head_dim ** 0.5)

    # Fused full-width projections (N = D_out keeps MXU columns filled).
    q = jnp.dot(x_q, wq_ref[...], preferred_element_type=jnp.float32)
    q = (q * scale).astype(compute_dtype)                                   # (TQ, D_out)
    k = jnp.dot(x_all, wk_ref[...],
                preferred_element_type=jnp.float32).astype(compute_dtype)   # (T, D_out)
    v = jnp.dot(x_all, wv_ref[...],
                preferred_element_type=jnp.float32).astype(compute_dtype)   # (T, D_out)

    # Causal mask for this query tile: global row ids vs key col ids.
    row = lax.broadcasted_iota(jnp.int32, (q_tile, 1), 0) + q_start
    col = lax.broadcasted_iota(jnp.int32, (1, T), 1)
    masked = col > row                                                      # (TQ, T)

    use_approx = jnp.result_type(compute_dtype) != jnp.float32

    ctx_parts = []
    # Static (unrolled) loop over heads; per-head slices of the fused projections.
    for h in range(num_heads):
        sl = slice(h * head_dim, (h + 1) * head_dim)
        q_h, k_h, v_h = q[:, sl], k[:, sl], v[:, sl]
        # (TQ, T) scores; contract last dims -> no explicit k transpose.
        s = lax.dot_general(q_h, k_h, (((1,), (1,)), ((), ())),
                            preferred_element_type=jnp.float32)
        s = jnp.where(masked, jnp.float32(-1e30), s)
        m = jnp.max(s, axis=-1, keepdims=True)
        e = jnp.exp(s - m)
        denom = jnp.sum(e, axis=-1, keepdims=True)
        p = (e * pl.reciprocal(denom, approx=use_approx)).astype(compute_dtype)
        ctx_parts.append(jnp.dot(p, v_h, preferred_element_type=jnp.float32))

    ctx = jnp.concatenate(ctx_parts, axis=-1).astype(compute_dtype)         # (TQ, D_out)

    # Fused output projection + bias; lane-dense (TQ, D_out) store.
    y = jnp.dot(ctx, wo_ref[...], preferred_element_type=jnp.float32)
    y = y + bo_ref[...].astype(jnp.float32)
    out_ref[0] = y.astype(out_ref.dtype)


def _pick_q_tile(T):
    for cand in (256, 128):   # <=256 keeps (TQ, T) temporaries small (v7x 64 MiB VMEM)
        if T % cand == 0:
            return cand
    return T


def multi_head_attention(x, wq, wk, wv, wo, bo, num_heads, *,
                         compute_dtype=jnp.bfloat16, q_tile=None):
    """x: (B, T, D_in); wq/wk/wv: (D_in, D_out) pre-transposed (x @ w == nn.Linear);
    wo: (D_out, D_out) pre-transposed; bo: (D_out,). Eval-mode dropout (identity)."""
    B, T, D_in = x.shape
    D_out = wq.shape[1]
    assert D_out % num_heads == 0
    if q_tile is None:
        q_tile = _pick_q_tile(T)
    assert T % q_tile == 0, "q_tile must divide T"
    n_q_tiles = T // q_tile

    kernel = functools.partial(_mha_kernel, num_heads=num_heads,
                               q_tile=q_tile, compute_dtype=compute_dtype)

    return pl.pallas_call(
        kernel,
        out_shape=jax.ShapeDtypeStruct((B, T, D_out), x.dtype),
        grid_spec=pltpu.PrefetchScalarGridSpec(
            num_scalar_prefetch=0,
            grid=(B, n_q_tiles),
            in_specs=[
                pl.BlockSpec((1, T, D_in), lambda b, qi: (b, 0, 0)),     # x (resident across qi)
                pl.BlockSpec((D_in, D_out), lambda b, qi: (0, 0)),       # wq
                pl.BlockSpec((D_in, D_out), lambda b, qi: (0, 0)),       # wk
                pl.BlockSpec((D_in, D_out), lambda b, qi: (0, 0)),       # wv
                pl.BlockSpec((D_out, D_out), lambda b, qi: (0, 0)),      # wo
                pl.BlockSpec((1, D_out), lambda b, qi: (0, 0)),          # bo
            ],
            out_specs=pl.BlockSpec((1, q_tile, D_out), lambda b, qi: (b, qi, 0)),
        ),
        compiler_params=pltpu.CompilerParams(
            dimension_semantics=("parallel", "parallel"),
            vmem_limit_bytes=48 * 1024 * 1024),
    )(x.astype(compute_dtype),
      wq.astype(compute_dtype), wk.astype(compute_dtype),
      wv.astype(compute_dtype), wo.astype(compute_dtype),
      bo.reshape(1, D_out).astype(jnp.float32))


def _reference(x, wq, wk, wv, wo, bo, num_heads):
    B, T, D_in = x.shape
    D_out = wq.shape[1]
    H, hd = num_heads, D_out // num_heads
    q = (x @ wq).reshape(B, T, H, hd).transpose(0, 2, 1, 3)
    k = (x @ wk).reshape(B, T, H, hd).transpose(0, 2, 1, 3)
    v = (x @ wv).reshape(B, T, H, hd).transpose(0, 2, 1, 3)
    s = jnp.einsum("bhqd,bhkd->bhqk", q, k)
    mask = jnp.triu(jnp.ones((T, T), bool), k=1)
    s = jnp.where(mask, -jnp.inf, s) / math.sqrt(hd)
    w = jax.nn.softmax(s, axis=-1)
    ctx = jnp.einsum("bhqk,bhkd->bhqd", w, v).transpose(0, 2, 1, 3).reshape(B, T, D_out)
    return ctx @ wo + bo


if __name__ == "__main__":
    # Small shapes consistent with the module's forward.
    B, T = 2, 8
    input_dim, output_dim = 32, 32
    num_heads = 4

    key = jax.random.PRNGKey(0)
    kx, kq, kk, kv, ko, kb = jax.random.split(key, 6)

    x = jax.random.normal(kx, (B, T, input_dim), dtype=jnp.float32)
    # Weights stored pre-transposed: (in, out), so x @ W == nn.Linear(x)
    wq = jax.random.normal(kq, (input_dim, output_dim), dtype=jnp.float32) * 0.1
    wk = jax.random.normal(kk, (input_dim, output_dim), dtype=jnp.float32) * 0.1
    wv = jax.random.normal(kv, (input_dim, output_dim), dtype=jnp.float32) * 0.1
    wo = jax.random.normal(ko, (output_dim, output_dim), dtype=jnp.float32) * 0.1
    bo = jax.random.normal(kb, (output_dim,), dtype=jnp.float32) * 0.1

    ref = _reference(x, wq, wk, wv, wo, bo, num_heads)

    # f32 path: strict numeric check against the reference.
    out_f32 = multi_head_attention(x, wq, wk, wv, wo, bo, num_heads,
                                   compute_dtype=jnp.float32)
    out_f32 = jax.block_until_ready(out_f32)
    assert out_f32.shape == (B, T, output_dim)
    assert jnp.allclose(out_f32, ref, atol=5e-4, rtol=5e-4)

    # bf16 MXU path (default): looser tolerance for bf16 operand rounding.
    out_bf16 = multi_head_attention(x, wq, wk, wv, wo, bo, num_heads)
    out_bf16 = jax.block_until_ready(out_bf16)
    assert out_bf16.shape == (B, T, output_dim)
    assert jnp.allclose(out_bf16, ref, atol=5e-2, rtol=5e-2)

    print("KERNEL_OK")
</pallas_src>

<mosaic_0001>
module attributes {stable_mosaic.version = 11 : i64} {
  func.func @_mha_kernel(%arg0: i32, %arg1: i32, %arg2: memref<1x8x32xf32, #tpu.memory_space<vmem>>, %arg3: memref<32x32xf32, #tpu.memory_space<vmem>>, %arg4: memref<32x32xf32, #tpu.memory_space<vmem>>, %arg5: memref<32x32xf32, #tpu.memory_space<vmem>>, %arg6: memref<32x32xf32, #tpu.memory_space<vmem>>, %arg7: memref<1x32xf32, #tpu.memory_space<vmem>>, %arg8: memref<1x8x32xf32, #tpu.memory_space<vmem>>) attributes {dimension_semantics = [#tpu.dimension_semantics<parallel>, #tpu.dimension_semantics<parallel>], iteration_bounds = array<i64: 2, 1>, scalar_prefetch = 0 : i64, scratch_operands = 0 : i64, tpu.core_type = #tpu.core_type<tc>, window_params = [{transform_indices = @transform_0, window_bounds = array<i64: 1, 8, 32>}, {pipeline_mode = #tpu.pipeline_mode<synchronous>, transform_indices = @transform_1, window_bounds = array<i64: 32, 32>}, {pipeline_mode = #tpu.pipeline_mode<synchronous>, transform_indices = @transform_2, window_bounds = array<i64: 32, 32>}, {pipeline_mode = #tpu.pipeline_mode<synchronous>, transform_indices = @transform_3, window_bounds = array<i64: 32, 32>}, {pipeline_mode = #tpu.pipeline_mode<synchronous>, transform_indices = @transform_4, window_bounds = array<i64: 32, 32>}, {pipeline_mode = #tpu.pipeline_mode<synchronous>, transform_indices = @transform_5, window_bounds = array<i64: 1, 32>}, {transform_indices = @transform_6, window_bounds = array<i64: 1, 8, 32>}]} {
    %c8_i32 = arith.constant 8 : i32
    %0 = arith.muli %arg1, %c8_i32 : i32
    %1 = tpu.assume_multiple %0, 8 : i32
    %c0 = arith.constant 0 : index
    %c0_0 = arith.constant 0 : index
    %c0_1 = arith.constant 0 : index
    %2 = vector.load %arg2[%c0, %c0_0, %c0_1] : memref<1x8x32xf32, #tpu.memory_space<vmem>>, vector<1x8x32xf32>
    %3 = vector.shape_cast %2 : vector<1x8x32xf32> to vector<8x32xf32>
    %c0_2 = arith.constant 0 : index
    %4 = arith.index_cast %1 : i32 to index
    %c0_3 = arith.constant 0 : index
    %5 = vector.load %arg2[%c0_2, %4, %c0_3] : memref<1x8x32xf32, #tpu.memory_space<vmem>>, vector<1x8x32xf32>
    %6 = vector.shape_cast %5 : vector<1x8x32xf32> to vector<8x32xf32>
    %c0_4 = arith.constant 0 : index
    %c0_5 = arith.constant 0 : index
    %7 = vector.load %arg3[%c0_4, %c0_5] : memref<32x32xf32, #tpu.memory_space<vmem>>, vector<32x32xf32>
    %cst = arith.constant dense<0.000000e+00> : vector<8x32xf32>
    %8 = tpu.matmul %6, %7, %cst {dimension_numbers = #tpu.dot_dimension_numbers<[1], [0], [0], [1], [0, 0, 1, 1], [], []>} : vector<8x32xf32>, vector<32x32xf32>, vector<8x32xf32> -> vector<8x32xf32>
    %cst_6 = arith.constant 0.353553385 : f32
    %9 = vector.broadcast %cst_6 : f32 to vector<8x32xf32>
    %10 = arith.mulf %8, %9 : vector<8x32xf32>
    %c0_7 = arith.constant 0 : index
    %c0_8 = arith.constant 0 : index
    %11 = vector.load %arg4[%c0_7, %c0_8] : memref<32x32xf32, #tpu.memory_space<vmem>>, vector<32x32xf32>
    %cst_9 = arith.constant dense<0.000000e+00> : vector<8x32xf32>
    %12 = tpu.matmul %3, %11, %cst_9 {dimension_numbers = #tpu.dot_dimension_numbers<[1], [0], [0], [1], [0, 0, 1, 1], [], []>} : vector<8x32xf32>, vector<32x32xf32>, vector<8x32xf32> -> vector<8x32xf32>
    %c0_10 = arith.constant 0 : index
    %c0_11 = arith.constant 0 : index
    %13 = vector.load %arg5[%c0_10, %c0_11] : memref<32x32xf32, #tpu.memory_space<vmem>>, vector<32x32xf32>
    %cst_12 = arith.constant dense<0.000000e+00> : vector<8x32xf32>
    %14 = tpu.matmul %3, %13, %cst_12 {dimension_numbers = #tpu.dot_dimension_numbers<[1], [0], [0], [1], [0, 0, 1, 1], [], []>} : vector<8x32xf32>, vector<32x32xf32>, vector<8x32xf32> -> vector<8x32xf32>
    %15 = tpu.iota {dimensions = array<i32: 0>} : vector<8x1xi32>
    %16 = vector.broadcast %1 : i32 to vector<8x1xi32>
    %17 = arith.addi %15, %16 : vector<8x1xi32>
    %18 = tpu.iota {dimensions = array<i32: 1>} : vector<1x8xi32>
    %19 = vector.broadcast %18 : vector<1x8xi32> to vector<8x8xi32>
    %20 = vector.broadcast %17 : vector<8x1xi32> to vector<8x8xi32>
    %21 = arith.cmpi sgt, %19, %20 : vector<8x8xi32>
    %22 = vector.extract_strided_slice %10 {offsets = [0, 0], sizes = [8, 8], strides = [1, 1]} : vector<8x32xf32> to vector<8x8xf32>
    %23 = vector.extract_strided_slice %12 {offsets = [0, 0], sizes = [8, 8], strides = [1, 1]} : vector<8x32xf32> to vector<8x8xf32>
    %24 = vector.extract_strided_slice %14 {offsets = [0, 0], sizes = [8, 8], strides = [1, 1]} : vector<8x32xf32> to vector<8x8xf32>
    %cst_13 = arith.constant dense<0.000000e+00> : vector<8x8xf32>
    %25 = tpu.matmul %22, %23, %cst_13 {dimension_numbers = #tpu.dot_dimension_numbers<[1], [1], [0], [0], [0, 0, 1, 0], [], []>} : vector<8x8xf32>, vector<8x8xf32>, vector<8x8xf32> -> vector<8x8xf32>
    %cst_14 = arith.constant -1.000000e+30 : f32
    %26 = vector.broadcast %cst_14 : f32 to vector<8x8xf32>
    %27 = arith.select %21, %26, %25 : vector<8x8xi1>, vector<8x8xf32>
    %cst_15 = arith.constant dense<0xFF800000> : vector<8xf32>
    %28 = vector.multi_reduction <maximumf>, %27, %cst_15 [1] : vector<8x8xf32> to vector<8xf32>
    %29 = vector.shape_cast %28 : vector<8xf32> to vector<8x1xf32>
    %30 = vector.broadcast %29 : vector<8x1xf32> to vector<8x8xf32>
    %31 = arith.subf %27, %30 : vector<8x8xf32>
    %32 = math.exp %31 : vector<8x8xf32>
    %cst_16 = arith.constant dense<0.000000e+00> : vector<8xf32>
    %33 = vector.multi_reduction <add>, %32, %cst_16 [1] : vector<8x8xf32> to vector<8xf32>
    %34 = vector.shape_cast %33 : vector<8xf32> to vector<8x1xf32>
    %35 = tpu.reciprocal %34 : vector<8x1xf32> -> vector<8x1xf32>
    %36 = vector.broadcast %35 : vector<8x1xf32> to vector<8x8xf32>
    %37 = arith.mulf %32, %36 : vector<8x8xf32>
    %cst_17 = arith.constant dense<0.000000e+00> : vector<8x8xf32>
    %38 = tpu.matmul %37, %24, %cst_17 {dimension_numbers = #tpu.dot_dimension_numbers<[1], [0], [0], [1], [0, 0, 1, 1], [], []>} : vector<8x8xf32>, vector<8x8xf32>, vector<8x8xf32> -> vector<8x8xf32>
    %39 = vector.extract_strided_slice %10 {offsets = [0, 8], sizes = [8, 8], strides = [1, 1]} : vector<8x32xf32> to vector<8x8xf32>
    %40 = vector.extract_strided_slice %12 {offsets = [0, 8], sizes = [8, 8], strides = [1, 1]} : vector<8x32xf32> to vector<8x8xf32>
    %41 = vector.extract_strided_slice %14 {offsets = [0, 8], sizes = [8, 8], strides = [1, 1]} : vector<8x32xf32> to vector<8x8xf32>
    %cst_18 = arith.constant dense<0.000000e+00> : vector<8x8xf32>
    %42 = tpu.matmul %39, %40, %cst_18 {dimension_numbers = #tpu.dot_dimension_numbers<[1], [1], [0], [0], [0, 0, 1, 0], [], []>} : vector<8x8xf32>, vector<8x8xf32>, vector<8x8xf32> -> vector<8x8xf32>
    %cst_19 = arith.constant -1.000000e+30 : f32
    %43 = vector.broadcast %cst_19 : f32 to vector<8x8xf32>
    %44 = arith.select %21, %43, %42 : vector<8x8xi1>, vector<8x8xf32>
    %cst_20 = arith.constant dense<0xFF800000> : vector<8xf32>
    %45 = vector.multi_reduction <maximumf>, %44, %cst_20 [1] : vector<8x8xf32> to vector<8xf32>
    %46 = vector.shape_cast %45 : vector<8xf32> to vector<8x1xf32>
    %47 = vector.broadcast %46 : vector<8x1xf32> to vector<8x8xf32>
    %48 = arith.subf %44, %47 : vector<8x8xf32>
    %49 = math.exp %48 : vector<8x8xf32>
    %cst_21 = arith.constant dense<0.000000e+00> : vector<8xf32>
    %50 = vector.multi_reduction <add>, %49, %cst_21 [1] : vector<8x8xf32> to vector<8xf32>
    %51 = vector.shape_cast %50 : vector<8xf32> to vector<8x1xf32>
    %52 = tpu.reciprocal %51 : vector<8x1xf32> -> vector<8x1xf32>
    %53 = vector.broadcast %52 : vector<8x1xf32> to vector<8x8xf32>
    %54 = arith.mulf %49, %53 : vector<8x8xf32>
    %cst_22 = arith.constant dense<0.000000e+00> : vector<8x8xf32>
    %55 = tpu.matmul %54, %41, %cst_22 {dimension_numbers = #tpu.dot_dimension_numbers<[1], [0], [0], [1], [0, 0, 1, 1], [], []>} : vector<8x8xf32>, vector<8x8xf32>, vector<8x8xf32> -> vector<8x8xf32>
    %56 = vector.extract_strided_slice %10 {offsets = [0, 16], sizes = [8, 8], strides = [1, 1]} : vector<8x32xf32> to vector<8x8xf32>
    %57 = vector.extract_strided_slice %12 {offsets = [0, 16], sizes = [8, 8], strides = [1, 1]} : vector<8x32xf32> to vector<8x8xf32>
    %58 = vector.extract_strided_slice %14 {offsets = [0, 16], sizes = [8, 8], strides = [1, 1]} : vector<8x32xf32> to vector<8x8xf32>
    %cst_23 = arith.constant dense<0.000000e+00> : vector<8x8xf32>
    %59 = tpu.matmul %56, %57, %cst_23 {dimension_numbers = #tpu.dot_dimension_numbers<[1], [1], [0], [0], [0, 0, 1, 0], [], []>} : vector<8x8xf32>, vector<8x8xf32>, vector<8x8xf32> -> vector<8x8xf32>
    %cst_24 = arith.constant -1.000000e+30 : f32
    %60 = vector.broadcast %cst_24 : f32 to vector<8x8xf32>
    %61 = arith.select %21, %60, %59 : vector<8x8xi1>, vector<8x8xf32>
    %cst_25 = arith.constant dense<0xFF800000> : vector<8xf32>
    %62 = vector.multi_reduction <maximumf>, %61, %cst_25 [1] : vector<8x8xf32> to vector<8xf32>
    %63 = vector.shape_cast %62 : vector<8xf32> to vector<8x1xf32>
    %64 = vector.broadcast %63 : vector<8x1xf32> to vector<8x8xf32>
    %65 = arith.subf %61, %64 : vector<8x8xf32>
    %66 = math.exp %65 : vector<8x8xf32>
    %cst_26 = arith.constant dense<0.000000e+00> : vector<8xf32>
    %67 = vector.multi_reduction <add>, %66, %cst_26 [1] : vector<8x8xf32> to vector<8xf32>
    %68 = vector.shape_cast %67 : vector<8xf32> to vector<8x1xf32>
    %69 = tpu.reciprocal %68 : vector<8x1xf32> -> vector<8x1xf32>
    %70 = vector.broadcast %69 : vector<8x1xf32> to vector<8x8xf32>
    %71 = arith.mulf %66, %70 : vector<8x8xf32>
    %cst_27 = arith.constant dense<0.000000e+00> : vector<8x8xf32>
    %72 = tpu.matmul %71, %58, %cst_27 {dimension_numbers = #tpu.dot_dimension_numbers<[1], [0], [0], [1], [0, 0, 1, 1], [], []>} : vector<8x8xf32>, vector<8x8xf32>, vector<8x8xf32> -> vector<8x8xf32>
    %73 = vector.extract_strided_slice %10 {offsets = [0, 24], sizes = [8, 8], strides = [1, 1]} : vector<8x32xf32> to vector<8x8xf32>
    %74 = vector.extract_strided_slice %12 {offsets = [0, 24], sizes = [8, 8], strides = [1, 1]} : vector<8x32xf32> to vector<8x8xf32>
    %75 = vector.extract_strided_slice %14 {offsets = [0, 24], sizes = [8, 8], strides = [1, 1]} : vector<8x32xf32> to vector<8x8xf32>
    %cst_28 = arith.constant dense<0.000000e+00> : vector<8x8xf32>
    %76 = tpu.matmul %73, %74, %cst_28 {dimension_numbers = #tpu.dot_dimension_numbers<[1], [1], [0], [0], [0, 0, 1, 0], [], []>} : vector<8x8xf32>, vector<8x8xf32>, vector<8x8xf32> -> vector<8x8xf32>
    %cst_29 = arith.constant -1.000000e+30 : f32
    %77 = vector.broadcast %cst_29 : f32 to vector<8x8xf32>
    %78 = arith.select %21, %77, %76 : vector<8x8xi1>, vector<8x8xf32>
    %cst_30 = arith.constant dense<0xFF800000> : vector<8xf32>
    %79 = vector.multi_reduction <maximumf>, %78, %cst_30 [1] : vector<8x8xf32> to vector<8xf32>
    %80 = vector.shape_cast %79 : vector<8xf32> to vector<8x1xf32>
    %81 = vector.broadcast %80 : vector<8x1xf32> to vector<8x8xf32>
    %82 = arith.subf %78, %81 : vector<8x8xf32>
    %83 = math.exp %82 : vector<8x8xf32>
    %cst_31 = arith.constant dense<0.000000e+00> : vector<8xf32>
    %84 = vector.multi_reduction <add>, %83, %cst_31 [1] : vector<8x8xf32> to vector<8xf32>
    %85 = vector.shape_cast %84 : vector<8xf32> to vector<8x1xf32>
    %86 = tpu.reciprocal %85 : vector<8x1xf32> -> vector<8x1xf32>
    %87 = vector.broadcast %86 : vector<8x1xf32> to vector<8x8xf32>
    %88 = arith.mulf %83, %87 : vector<8x8xf32>
    %cst_32 = arith.constant dense<0.000000e+00> : vector<8x8xf32>
    %89 = tpu.matmul %88, %75, %cst_32 {dimension_numbers = #tpu.dot_dimension_numbers<[1], [0], [0], [1], [0, 0, 1, 1], [], []>} : vector<8x8xf32>, vector<8x8xf32>, vector<8x8xf32> -> vector<8x8xf32>
    %90 = tpu.concatenate %38, %55, %72, %89 in 1 : vector<8x8xf32>, vector<8x8xf32>, vector<8x8xf32>, vector<8x8xf32> -> vector<8x32xf32>
    %c0_33 = arith.constant 0 : index
    %c0_34 = arith.constant 0 : index
    %91 = vector.load %arg6[%c0_33, %c0_34] : memref<32x32xf32, #tpu.memory_space<vmem>>, vector<32x32xf32>
    %cst_35 = arith.constant dense<0.000000e+00> : vector<8x32xf32>
    %92 = tpu.matmul %90, %91, %cst_35 {dimension_numbers = #tpu.dot_dimension_numbers<[1], [0], [0], [1], [0, 0, 1, 1], [], []>} : vector<8x32xf32>, vector<32x32xf32>, vector<8x32xf32> -> vector<8x32xf32>
    %c0_36 = arith.constant 0 : index
    %c0_37 = arith.constant 0 : index
    %93 = vector.load %arg7[%c0_36, %c0_37] : memref<1x32xf32, #tpu.memory_space<vmem>>, vector<1x32xf32>
    %94 = vector.broadcast %93 : vector<1x32xf32> to vector<8x32xf32>
    %95 = arith.addf %92, %94 : vector<8x32xf32>
    %c0_38 = arith.constant 0 : index
    %c0_39 = arith.constant 0 : index
    %c0_40 = arith.constant 0 : index
    %96 = vector.load %arg8[%c0_38, %c0_39, %c0_40] : memref<1x8x32xf32, #tpu.memory_space<vmem>>, vector<1x8x32xf32>
    %97 = vector.shape_cast %96 : vector<1x8x32xf32> to vector<8x32xf32>
    %98 = vector.shape_cast %95 : vector<8x32xf32> to vector<1x8x32xf32>
    tpu.vector_store %arg8[%c0_38, %c0_39, %c0_40], %98 {strides = array<i32>} : memref<1x8x32xf32, #tpu.memory_space<vmem>>, vector<1x8x32xf32>,
    return
  }
  func.func @transform_0(%arg0: i32, %arg1: i32) -> (i32, i32, i32) {
    %c0_i32 = arith.constant 0 : i32
    %c0_i32_0 = arith.constant 0 : i32
    %c0_i32_1 = arith.constant 0 : i32
    return %arg0, %c0_i32, %c0_i32_0 : i32, i32, i32
  }
  func.func @transform_1(%arg0: i32, %arg1: i32) -> (i32, i32) {
    %c0_i32 = arith.constant 0 : i32
    %c0_i32_0 = arith.constant 0 : i32
    %c0_i32_1 = arith.constant 0 : i32
    return %c0_i32, %c0_i32_0 : i32, i32
  }
  func.func @transform_2(%arg0: i32, %arg1: i32) -> (i32, i32) {
    %c0_i32 = arith.constant 0 : i32
    %c0_i32_0 = arith.constant 0 : i32
    %c0_i32_1 = arith.constant 0 : i32
    return %c0_i32, %c0_i32_0 : i32, i32
  }
  func.func @transform_3(%arg0: i32, %arg1: i32) -> (i32, i32) {
    %c0_i32 = arith.constant 0 : i32
    %c0_i32_0 = arith.constant 0 : i32
    %c0_i32_1 = arith.constant 0 : i32
    return %c0_i32, %c0_i32_0 : i32, i32
  }
  func.func @transform_4(%arg0: i32, %arg1: i32) -> (i32, i32) {
    %c0_i32 = arith.constant 0 : i32
    %c0_i32_0 = arith.constant 0 : i32
    %c0_i32_1 = arith.constant 0 : i32
    return %c0_i32, %c0_i32_0 : i32, i32
  }
  func.func @transform_5(%arg0: i32, %arg1: i32) -> (i32, i32) {
    %c0_i32 = arith.constant 0 : i32
    %c0_i32_0 = arith.constant 0 : i32
    %c0_i32_1 = arith.constant 0 : i32
    return %c0_i32, %c0_i32_0 : i32, i32
  }
  func.func @transform_6(%arg0: i32, %arg1: i32) -> (i32, i32, i32) {
    %c0_i32 = arith.constant 0 : i32
    %c0_i32_0 = arith.constant 0 : i32
    return %arg0, %arg1, %c0_i32 : i32, i32, i32
  }
}

</mosaic_0001>

<llo_original>
// kernel: tpu_custom_call.1
$region0: #{tpu_custom_call.1}
  #allocation0 [shape = 'u32[]', space=smem, size = 0x4, offset = 0x4, fixed_abs, tag = 'smem constant byte address 0x4 - core index']
  #allocation1 [shape = 'u32[72,128]{1,0:T(1,128)}', space=vmem, size = 0x9000, scoped, tag = 'internal scratch']
  %s0 = inlined_call_operand.hbm [shape: f32[2,8,32], index: 0, kind: input, shape index: {}]
  %s1 = inlined_call_operand.hbm [shape: f32[32,32], index: 1, kind: input, shape index: {}]
  %s2 = inlined_call_operand.hbm [shape: f32[32,32], index: 2, kind: input, shape index: {}]
  %s3 = inlined_call_operand.hbm [shape: f32[32,32], index: 3, kind: input, shape index: {}]
  %s4 = inlined_call_operand.hbm [shape: f32[32,32], index: 4, kind: input, shape index: {}]
  %s5 = inlined_call_operand.vmem [shape: f32[1,32], index: 5, kind: input, shape index: {}]
  %s6 = inlined_call_operand.hbm [shape: f32[2,8,32], index: 6, kind: output, shape index: {}]
  %s7 = sld [smem:[#allocation0]]
  $region77: #{tpu_custom_call.1} parent=0
    _
  %s9 = ssub.s32 1, %s7
  %s10 = scalar_select 0, %s9, %s7
  $region1: #{tpu_custom_call.1} parent=0
    #allocation2 [shape = 'u8[8192]{0}', space=vmem, size = 0x2000, scoped, tag = 'input window, operand 0']
    #allocation3 [shape = 's32[2]{0}', space=sflag, size = 0x8, scoped, tag = 'scoped memory for tpu_custom_call.1']
    #allocation4 [shape = 's32[2]{0}', space=sflag, size = 0x8, scoped, tag = 'scoped memory for tpu_custom_call.1']
    #allocation5 [shape = 'u8[16384]{0}', space=vmem, size = 0x4000, scoped, tag = 'input window, operand 1, single buffered']
    #allocation6 [shape = 's32[1]{0}', space=sflag, size = 0x4, scoped, tag = 'scoped memory for tpu_custom_call.1']
    #allocation7 [shape = 'u8[16384]{0}', space=vmem, size = 0x4000, scoped, tag = 'input window, operand 2, single buffered']
    #allocation8 [shape = 'u8[16384]{0}', space=vmem, size = 0x4000, scoped, tag = 'input window, operand 3, single buffered']
    #allocation9 [shape = 's32[1]{0}', space=sflag, size = 0x4, scoped, tag = 'scoped memory for tpu_custom_call.1']
    #allocation10 [shape = 'u8[16384]{0}', space=vmem, size = 0x4000, scoped, tag = 'input window, operand 4, single buffered']
    #allocation11 [shape = 'u8[8192]{0}', space=vmem, size = 0x2000, scoped, tag = 'output window, operand 0']
    %11 = vsyncpa [#allocation3], 0
    %s12 = scalar_lea.sflag [#allocation3], 1
    %13 = vsyncpa %s12, 0
    %14 = vsyncpa [#allocation6], 0
    %15 = vsyncpa [#allocation9], 0
    %16 = vsyncpa [#allocation4], 0
    %s17 = scalar_lea.sflag [#allocation4], 1
    %18 = vsyncpa %s17, 0
    loop: start=0, step=1, limit=4
    $region2: #{tpu_custom_call.1} parent=1 // loop_pre_header
      _
    $region3: #{tpu_custom_call.1} parent=1 // loop_header
      %s20 = sphi 0, %s24
      %p21 = scmp.ge.s32.totalorder %s20, 4
      %s27 = sphi 0, %s39
      %s28 = sphi 0, %s35
      %s29 = sphi 0, %s27
      %s30 = sphi 0, %s28
      %s31 = sphi 0, %s29
      %s32 = sphi 0, %s30
      %s42 = sphi 0, %s44
      %s45 = sphi 0, %s42
      %s46 = sphi 0, %s45
      %s62 = sphi 0, %s46
      %s66 = sphi 0, %s66
      %s68 = sphi 0, %s66
      %s69 = sphi 0, %s68
      %s83 = sphi 0, %s69
      %s87 = sphi 0, %s87
      %s89 = sphi 0, %s87
      %s90 = sphi 0, %s89
      %s104 = sphi 0, %s90
      %s108 = sphi 0, %s108
      %s110 = sphi 0, %s108
      %s111 = sphi 0, %s110
      %s125 = sphi 0, %s111
      %s129 = sphi 0, %s129
      %s131 = sphi 0, %s129
      %s132 = sphi 0, %s131
      %s146 = sphi 0, %s132
      %s150 = sphi 0, %s150
      %s152 = sphi 0, %s150
      %s153 = sphi 0, %s152
      %s167 = sphi 0, %s153
      %s175 = sphi 0, %s177
      %s178 = sphi 0, %s175
      %s179 = sphi 0, %s178
      %s195 = sphi 0, %s179
    $region4: #{tpu_custom_call.1} parent=1 // loop_header_branch
      %23 = sbr.rel (%p21) target = $region8
    $region5: #{tpu_custom_call.1} parent=1 // loop_body
      %s25 = ssub.s32 %s20, 1
      %s26 = ssub.s32 %s20, 2
      %s33 = sadd.s32 1, %s28
      %p34 = scmp.ge.s32.totalorder %s33, 1
      %s35 = scalar_select %p34, 0, %s33
      %s36 = sadd.s32 1, %s27
      %s37 = scalar_select %p34, %s36, %s27
      %p38 = scmp.ge.s32.totalorder %s37, 2
      %s39 = scalar_select %p38, 0, %s37
      %s40 = ssub.s32 %s27, %s39
      %p41 = scmp.eq.s32.totalorder %s40, 0
      %s43 = sadd.s32 %s42, 1
      %s44 = scalar_select %p41, %s42, %s43
      %p47 = pneg %p41
      %p48 = scmp.eq.s32.totalorder %s20, 1
      %p49 = por %p47, %p48
      %p50 = scmp.ne.s32.totalorder %s42, %s45
      %p51 = scmp.eq.s32.totalorder %s20, 0
      %p52 = por %p50, %p51
      %p53 = scmp.ne.s32.totalorder %s42, %s45
      %p54 = scmp.eq.s32.totalorder %s25, 1
      %p55 = por %p53, %p54
      %p56 = scmp.ne.s32.totalorder %s45, %s46
      %p57 = scmp.eq.s32.totalorder %s25, 0
      %p58 = por %p56, %p57
      %p59 = scmp.ne.s32.totalorder %s45, %s46
      %p60 = scmp.eq.s32.totalorder %s26, 1
      %p61 = por %p59, %p60
      %p63 = scmp.ne.s32.totalorder %s46, %s62
      %p64 = scmp.eq.s32.totalorder %s26, 0
      %p65 = por %p63, %p64
      %s67 = sadd.s32 %s66, 1
      %p70 = scmp.eq.s32.totalorder %s20, 1
      %p71 = scmp.ne.s32.totalorder %s66, %s68
      %p72 = scmp.eq.s32.totalorder %s20, 0
      %p73 = por %p71, %p72
      %p74 = scmp.ne.s32.totalorder %s66, %s68
      %p75 = scmp.eq.s32.totalorder %s25, 1
      %p76 = por %p74, %p75
      %p77 = scmp.ne.s32.totalorder %s68, %s69
      %p78 = scmp.eq.s32.totalorder %s25, 0
      %p79 = por %p77, %p78
      %p80 = scmp.ne.s32.totalorder %s68, %s69
      %p81 = scmp.eq.s32.totalorder %s26, 1
      %p82 = por %p80, %p81
      %p84 = scmp.ne.s32.totalorder %s69, %s83
      %p85 = scmp.eq.s32.totalorder %s26, 0
      %p86 = por %p84, %p85
      %s88 = sadd.s32 %s87, 1
      %p91 = scmp.eq.s32.totalorder %s20, 1
      %p92 = scmp.ne.s32.totalorder %s87, %s89
      %p93 = scmp.eq.s32.totalorder %s20, 0
      %p94 = por %p92, %p93
      %p95 = scmp.ne.s32.totalorder %s87, %s89
      %p96 = scmp.eq.s32.totalorder %s25, 1
      %p97 = por %p95, %p96
      %p98 = scmp.ne.s32.totalorder %s89, %s90
      %p99 = scmp.eq.s32.totalorder %s25, 0
      %p100 = por %p98, %p99
      %p101 = scmp.ne.s32.totalorder %s89, %s90
      %p102 = scmp.eq.s32.totalorder %s26, 1
      %p103 = por %p101, %p102
      %p105 = scmp.ne.s32.totalorder %s90, %s104
      %p106 = scmp.eq.s32.totalorder %s26, 0
      %p107 = por %p105, %p106
      %s109 = sadd.s32 %s108, 1
      %p112 = scmp.eq.s32.totalorder %s20, 1
      %p113 = scmp.ne.s32.totalorder %s108, %s110
      %p114 = scmp.eq.s32.totalorder %s20, 0
      %p115 = por %p113, %p114
      %p116 = scmp.ne.s32.totalorder %s108, %s110
      %p117 = scmp.eq.s32.totalorder %s25, 1
      %p118 = por %p116, %p117
      %p119 = scmp.ne.s32.totalorder %s110, %s111
      %p120 = scmp.eq.s32.totalorder %s25, 0
      %p121 = por %p119, %p120
      %p122 = scmp.ne.s32.totalorder %s110, %s111
      %p123 = scmp.eq.s32.totalorder %s26, 1
      %p124 = por %p122, %p123
      %p126 = scmp.ne.s32.totalorder %s111, %s125
      %p127 = scmp.eq.s32.totalorder %s26, 0
      %p128 = por %p126, %p127
      %s130 = sadd.s32 %s129, 1
      %p133 = scmp.eq.s32.totalorder %s20, 1
      %p134 = scmp.ne.s32.totalorder %s129, %s131
      %p135 = scmp.eq.s32.totalorder %s20, 0
      %p136 = por %p134, %p135
      %p137 = scmp.ne.s32.totalorder %s129, %s131
      %p138 = scmp.eq.s32.totalorder %s25, 1
      %p139 = por %p137, %p138
      %p140 = scmp.ne.s32.totalorder %s131, %s132
      %p141 = scmp.eq.s32.totalorder %s25, 0
      %p142 = por %p140, %p141
      %p143 = scmp.ne.s32.totalorder %s131, %s132
      %p144 = scmp.eq.s32.totalorder %s26, 1
      %p145 = por %p143, %p144
      %p147 = scmp.ne.s32.totalorder %s132, %s146
      %p148 = scmp.eq.s32.totalorder %s26, 0
      %p149 = por %p147, %p148
      %s151 = sadd.s32 %s150, 1
      %p154 = scmp.eq.s32.totalorder %s20, 1
      %p155 = scmp.ne.s32.totalorder %s150, %s152
      %p156 = scmp.eq.s32.totalorder %s20, 0
      %p157 = por %p155, %p156
      %p158 = scmp.ne.s32.totalorder %s150, %s152
      %p159 = scmp.eq.s32.totalorder %s25, 1
      %p160 = por %p158, %p159
      %p161 = scmp.ne.s32.totalorder %s152, %s153
      %p162 = scmp.eq.s32.totalorder %s25, 0
      %p163 = por %p161, %p162
      %p164 = scmp.ne.s32.totalorder %s152, %s153
      %p165 = scmp.eq.s32.totalorder %s26, 1
      %p166 = por %p164, %p165
      %p168 = scmp.ne.s32.totalorder %s153, %s167
      %p169 = scmp.eq.s32.totalorder %s26, 0
      %p170 = por %p168, %p169
      %s171 = ssub.s32 %s27, %s39
      %s172 = ssub.s32 %s28, %s35
      %s173 = sor.u32 %s171, %s172
      %p174 = scmp.eq.s32.totalorder %s173, 0
      %s176 = sadd.s32 %s175, 1
      %s177 = scalar_select %p174, %s175, %s176
      %p180 = pneg %p174
      %p181 = scmp.eq.s32.totalorder %s20, 1
      %p182 = por %p180, %p181
      %p183 = scmp.ne.s32.totalorder %s175, %s178
      %p184 = scmp.eq.s32.totalorder %s20, 0
      %p185 = por %p183, %p184
      %p186 = scmp.ne.s32.totalorder %s175, %s178
      %p187 = scmp.eq.s32.totalorder %s25, 1
      %p188 = por %p186, %p187
      %p189 = scmp.ne.s32.totalorder %s178, %s179
      %p190 = scmp.eq.s32.totalorder %s25, 0
      %p191 = por %p189, %p190
      %p192 = scmp.ne.s32.totalorder %s178, %s179
      %p193 = scmp.eq.s32.totalorder %s26, 1
      %p194 = por %p192, %p193
      %p196 = scmp.ne.s32.totalorder %s179, %s195
      %p197 = scmp.eq.s32.totalorder %s26, 0
      %p198 = por %p196, %p197
      %p199 = scmp.le.s32.totalorder 1, %s20
      %p200 = scmp.lt.s32.totalorder %s20, 3
      %p201 = pnand %p199, %p200
      %p202 = pneg %p201
      // Predicated region
      $region9: #{tpu_custom_call.1} parent=5 // pred_check
        _
      $region10: #{tpu_custom_call.1} parent=5 // pred_check_branch
        %204 = sbr.rel (%p201) target = $region12
      $region11: #{tpu_custom_call.1} parent=5 // pred_region
        %s205 = ssub.s32 %s20, 1
        // Predicated region
        $region13: #{tpu_custom_call.1} parent=11 // pred_check
          %p206 = pneg %p79
        $region14: #{tpu_custom_call.1} parent=11 // pred_check_branch
          %208 = sbr.rel (%p206) target = $region16
        $region15: #{tpu_custom_call.1} parent=11 // pred_region
          %210 = vsyncadd [#allocation6], 0
          %s211 = sshll.u32 %s1, 4
          %s212 = int_to_ptr.hbm [resolvable:$true] %s211
          %s213 = sshll.u32 [#allocation5], 4
          %s214 = int_to_ptr.vmem [resolvable:$true] %s213
          %219 = dma.hbm_to_vmem [thread:$0]  %s212, 512, %s214, [#allocation6], 128, 128, 8
        $region16: #{tpu_custom_call.1} parent=11 // pred_fallthru
          _
        // Predicated region
        $region17: #{tpu_custom_call.1} parent=11 // pred_check
          %p220 = pneg %p100
        $region18: #{tpu_custom_call.1} parent=11 // pred_check_branch
          %222 = sbr.rel (%p220) target = $region20
        $region19: #{tpu_custom_call.1} parent=11 // pred_region
          %224 = vsyncadd [#allocation6], 0
          %s225 = sshll.u32 %s2, 4
          %s226 = int_to_ptr.hbm [resolvable:$true] %s225
          %s227 = sshll.u32 [#allocation7], 4
          %s228 = int_to_ptr.vmem [resolvable:$true] %s227
          %233 = dma.hbm_to_vmem [thread:$0]  %s226, 512, %s228, [#allocation6], 128, 128, 8
        $region20: #{tpu_custom_call.1} parent=11 // pred_fallthru
          _
        // Predicated region
        $region21: #{tpu_custom_call.1} parent=11 // pred_check
          %p234 = pneg %p121
        $region22: #{tpu_custom_call.1} parent=11 // pred_check_branch
          %236 = sbr.rel (%p234) target = $region24
        $region23: #{tpu_custom_call.1} parent=11 // pred_region
          %238 = vsyncadd [#allocation9], 0
          %s239 = sshll.u32 %s3, 4
          %s240 = int_to_ptr.hbm [resolvable:$true] %s239
          %s241 = sshll.u32 [#allocation8], 4
          %s242 = int_to_ptr.vmem [resolvable:$true] %s241
          %247 = dma.hbm_to_vmem [thread:$0]  %s240, 512, %s242, [#allocation9], 128, 128, 8
        $region24: #{tpu_custom_call.1} parent=11 // pred_fallthru
          _
        // Predicated region
        $region25: #{tpu_custom_call.1} parent=11 // pred_check
          %p248 = pneg %p142
        $region26: #{tpu_custom_call.1} parent=11 // pred_check_branch
          %250 = sbr.rel (%p248) target = $region28
        $region27: #{tpu_custom_call.1} parent=11 // pred_region
          %252 = vsyncadd [#allocation9], 0
          %s253 = sshll.u32 %s4, 4
          %s254 = int_to_ptr.hbm [resolvable:$true] %s253
          %s255 = sshll.u32 [#allocation10], 4
          %s256 = int_to_ptr.vmem [resolvable:$true] %s255
          %261 = dma.hbm_to_vmem [thread:$0]  %s254, 512, %s256, [#allocation9], 128, 128, 8
        $region28: #{tpu_custom_call.1} parent=11 // pred_fallthru
          _
        // Predicated region
        $region29: #{tpu_custom_call.1} parent=11 // pred_check
          %p262 = pneg %p163
        $region30: #{tpu_custom_call.1} parent=11 // pred_check_branch
          %264 = sbr.rel (%p262) target = $region32
        $region31: #{tpu_custom_call.1} parent=11 // pred_region
          _
        $region32: #{tpu_custom_call.1} parent=11 // pred_fallthru
          _
      $region12: #{tpu_custom_call.1} parent=5 // pred_fallthru
        _
      %p265 = scmp.lt.s32.totalorder %s20, 2
      // Predicated region
      $region33: #{tpu_custom_call.1} parent=5 // pred_check
        %p266 = pneg %p265
      $region34: #{tpu_custom_call.1} parent=5 // pred_check_branch
        %268 = sbr.rel (%p266) target = $region36
      $region35: #{tpu_custom_call.1} parent=5 // pred_region
        // Predicated region
        $region37: #{tpu_custom_call.1} parent=35 // pred_check
          %p269 = pneg %p52
        $region38: #{tpu_custom_call.1} parent=35 // pred_check_branch
          %271 = sbr.rel (%p269) target = $region40
        $region39: #{tpu_custom_call.1} parent=35 // pred_region
          %s272 = sand.u32 %s42, 1
          %s273 = scalar_lea.sflag [#allocation3], %s272
          %s274 = sand.u32 %s42, 1
          %s275 = smul.addr %s274, 8
          %s276 = scalar_lea.vmem [#allocation2], %s275
          %278 = vsyncadd %s273, 0
          %s279 = smul.addr %s27, 8
          %s280 = scalar_lea.hbm %s0, %s279
          %s282 = sshll.u32 %s280, 4
          %s283 = int_to_ptr.hbm [resolvable:$true] %s282
          %s284 = sshll.u32 %s276, 4
          %s285 = int_to_ptr.vmem [resolvable:$true] %s284
          %287 = dma.hbm_to_vmem [thread:$0]  %s283, 128, %s285, %s273
        $region40: #{tpu_custom_call.1} parent=35 // pred_fallthru
          _
      $region36: #{tpu_custom_call.1} parent=5 // pred_fallthru
        _
      %p288 = scmp.le.s32.totalorder 1, %s20
      %p289 = scmp.lt.s32.totalorder %s20, 3
      %p290 = pnand %p288, %p289
      %p291 = pneg %p290
      // Predicated region
      $region41: #{tpu_custom_call.1} parent=5 // pred_check
        _
      $region42: #{tpu_custom_call.1} parent=5 // pred_check_branch
        %293 = sbr.rel (%p290) target = $region44
      $region43: #{tpu_custom_call.1} parent=5 // pred_region
        %s294 = ssub.s32 %s20, 1
        %s295 = sand.u32 %s45, 1
        %s296 = scalar_lea.sflag [#allocation3], %s295
        %s297 = sand.u32 %s45, 1
        %s298 = smul.addr %s297, 8
        %s299 = scalar_lea.vmem [#allocation2], %s298
        // Predicated region
        $region45: #{tpu_custom_call.1} parent=43 // pred_check
          %p300 = pneg %p58
        $region46: #{tpu_custom_call.1} parent=43 // pred_check_branch
          %302 = sbr.rel (%p300) target = $region48
        $region47: #{tpu_custom_call.1} parent=43 // pred_region
          %304 = dma.done %s296, 128
        $region48: #{tpu_custom_call.1} parent=43 // pred_fallthru
          _
        // Predicated region
        $region49: #{tpu_custom_call.1} parent=43 // pred_check
          %p305 = pneg %p79
        $region50: #{tpu_custom_call.1} parent=43 // pred_check_branch
          %307 = sbr.rel (%p305) target = $region52
        $region51: #{tpu_custom_call.1} parent=43 // pred_region
          %309 = dma.done [#allocation6], 512
        $region52: #{tpu_custom_call.1} parent=43 // pred_fallthru
          _
        // Predicated region
        $region53: #{tpu_custom_call.1} parent=43 // pred_check
          %p310 = pneg %p100
        $region54: #{tpu_custom_call.1} parent=43 // pred_check_branch
          %312 = sbr.rel (%p310) target = $region56
        $region55: #{tpu_custom_call.1} parent=43 // pred_region
          %314 = dma.done [#allocation6], 512
        $region56: #{tpu_custom_call.1} parent=43 // pred_fallthru
          _
        // Predicated region
        $region57: #{tpu_custom_call.1} parent=43 // pred_check
          %p315 = pneg %p121
        $region58: #{tpu_custom_call.1} parent=43 // pred_check_branch
          %317 = sbr.rel (%p315) target = $region60
        $region59: #{tpu_custom_call.1} parent=43 // pred_region
          %319 = dma.done [#allocation9], 512
        $region60: #{tpu_custom_call.1} parent=43 // pred_fallthru
          _
        // Predicated region
        $region61: #{tpu_custom_call.1} parent=43 // pred_check
          %p320 = pneg %p142
        $region62: #{tpu_custom_call.1} parent=43 // pred_check_branch
          %322 = sbr.rel (%p320) target = $region64
        $region63: #{tpu_custom_call.1} parent=43 // pred_region
          %324 = dma.done [#allocation9], 512
        $region64: #{tpu_custom_call.1} parent=43 // pred_fallthru
          _
        %s325 = sand.u32 %s45, 1
        %s326 = scalar_lea.sflag [#allocation3], %s325
        %s327 = sand.u32 %s45, 1
        %s328 = smul.addr %s327, 8
        %s329 = scalar_lea.vmem [#allocation2], %s328
        %p330 = pneg %p58
        %p331 = pneg %p55
        %p332 = pneg %p79
        %p333 = pneg %p76
        %p334 = pneg %p100
        %p335 = pneg %p97
        %p336 = pneg %p121
        %p337 = pneg %p118
        %p338 = pneg %p142
        %p339 = pneg %p139
        %p340 = pneg %p163
        %p341 = pneg %p160
        %p342 = pneg %p191
        %p343 = pneg %p188
        %s344 = sand.u32 %s178, 1
        %s345 = scalar_lea.sflag [#allocation4], %s344
        %s346 = sand.u32 %s178, 1
        %s347 = smul.addr %s346, 8
        %s348 = scalar_lea.vmem [#allocation11], %s347
        %s349 = smul.u32 %s30, 8
        %v350 = vld [vmem:[%s299] sm:$0xff]
        %s351 = scalar_lea.vmem %s299, %s349 [#allocation2]
        %v352 = vld [vmem:[%s351] sm:$0xff]
        %v353 = vld [vmem:[#allocation5] sm:$0xff]
        %v354 = vld [vmem:[#allocation5 + $0x8] sm:$0xff]
        %v355 = vld [vmem:[#allocation5 + $0x10] sm:$0xff]
        %v356 = vld [vmem:[#allocation5 + $0x18] sm:$0xff]
        %vm357 = vcmask 261120
        %v359 = vsel %vm357, %v352, 0
        %361 = vmatpush.msra.mxu0 0.0
        %362 = vmatpush.msra.mxu0 0.0
        %363 = vmatpush.msra.mxu0 0.0
        %364 = vmatpush.msra.mxu0 0.0
        %365 = vmatpush.msra.mxu0 0.0
        %366 = vmatpush.msra.mxu0 0.0
        %367 = vmatpush.msra.mxu0 0.0
        %368 = vmatpush.msra.mxu0 0.0
        %369 = vmatpush.msra.mxu0 0.0
        %370 = vmatpush.msra.mxu0 0.0
        %371 = vmatpush.msra.mxu0 0.0
        %372 = vmatpush.msra.mxu0 0.0
        %373 = vmatpush.msra.mxu0 %v356
        %374 = vmatpush.msra.mxu0 %v355
        %375 = vmatpush.msra.mxu0 %v354
        %376 = vmatpush.msra.mxu0 %v353
        %377 = vmatmul.f32.gmra.mxu0 %v359
        %v378 = vpop.f32.mrf.mxu0
        %v379 = vadd.f32 0.0, %v378
        %380 = vdwg.mxu0
        %v381 = vmul.f32 %v379, 0.35355338
        %v382 = vld [vmem:[#allocation7] sm:$0xff]
        %v383 = vld [vmem:[#allocation7 + $0x8] sm:$0xff]
        %v384 = vld [vmem:[#allocation7 + $0x10] sm:$0xff]
        %v385 = vld [vmem:[#allocation7 + $0x18] sm:$0xff]
        %v387 = vsel %vm357, %v350, 0
        %389 = vmatpush.msra.mxu0 0.0
        %390 = vmatpush.msra.mxu0 0.0
        %391 = vmatpush.msra.mxu0 0.0
        %392 = vmatpush.msra.mxu0 0.0
        %393 = vmatpush.msra.mxu0 0.0
        %394 = vmatpush.msra.mxu0 0.0
        %395 = vmatpush.msra.mxu0 0.0
        %396 = vmatpush.msra.mxu0 0.0
        %397 = vmatpush.msra.mxu0 0.0
        %398 = vmatpush.msra.mxu0 0.0
        %399 = vmatpush.msra.mxu0 0.0
        %400 = vmatpush.msra.mxu0 0.0
        %401 = vmatpush.msra.mxu0 %v385
        %402 = vmatpush.msra.mxu0 %v384
        %403 = vmatpush.msra.mxu0 %v383
        %404 = vmatpush.msra.mxu0 %v382
        %405 = vmatmul.f32.gmra.mxu0 %v387
        %v406 = vpop.f32.mrf.mxu0
        %v407 = vadd.f32 0.0, %v406
        %408 = vdwg.mxu0
        %v409 = vld [vmem:[#allocation8] sm:$0xff]
        %v410 = vld [vmem:[#allocation8 + $0x8] sm:$0xff]
        %v411 = vld [vmem:[#allocation8 + $0x10] sm:$0xff]
        %v412 = vld [vmem:[#allocation8 + $0x18] sm:$0xff]
        %413 = vmatpush.msra.mxu0 0.0
        %414 = vmatpush.msra.mxu0 0.0
        %415 = vmatpush.msra.mxu0 0.0
        %416 = vmatpush.msra.mxu0 0.0
        %417 = vmatpush.msra.mxu0 0.0
        %418 = vmatpush.msra.mxu0 0.0
        %419 = vmatpush.msra.mxu0 0.0
        %420 = vmatpush.msra.mxu0 0.0
        %421 = vmatpush.msra.mxu0 0.0
        %422 = vmatpush.msra.mxu0 0.0
        %423 = vmatpush.msra.mxu0 0.0
        %424 = vmatpush.msra.mxu0 0.0
        %425 = vmatpush.msra.mxu0 %v412
        %426 = vmatpush.msra.mxu0 %v411
        %427 = vmatpush.msra.mxu0 %v410
        %428 = vmatpush.msra.mxu0 %v409
        %429 = vmatmul.f32.gmra.mxu0 %v387
        %v430 = vpop.f32.mrf.mxu0
        %v431 = vadd.f32 0.0, %v430
        %432 = vdwg.mxu0
        %v433 = vlaneseq
        %v434 = vshrl.u32 %v433, 7
        %v435 = vstv %s349
        %v436 = vadd.s32 %v434, %v435
        %v437 = vlaneseq
        %v438 = vand.u32 %v437, 127
        %vm439 = vcmp.gt.s32.totalorder %v438, %v436
        %vm440 = vcmask 64512
        %v442 = vsel %vm440, %v381, 0
        %v445 = vsel %vm440, %v407, 0
        %447 = vmatpush.xpose.msra.mxu0 0.0
        %448 = vmatpush.xpose.msra.mxu0 0.0
        %449 = vmatpush.xpose.msra.mxu0 0.0
        %450 = vmatpush.xpose.msra.mxu0 0.0
        %451 = vmatpush.xpose.msra.mxu0 0.0
        %452 = vmatpush.xpose.msra.mxu0 0.0
        %453 = vmatpush.xpose.msra.mxu0 0.0
        %454 = vmatpush.xpose.msra.mxu0 0.0
        %455 = vmatpush.xpose.msra.mxu0 0.0
        %456 = vmatpush.xpose.msra.mxu0 0.0
        %457 = vmatpush.xpose.msra.mxu0 0.0
        %458 = vmatpush.xpose.msra.mxu0 0.0
        %459 = vmatpush.xpose.msra.mxu0 0.0
        %460 = vmatpush.xpose.msra.mxu0 0.0
        %461 = vmatpush.xpose.msra.mxu0 0.0
        %462 = vmatpush.xpose.msra.mxu0 %v445
        %463 = vmatmul.f32.gmra.mxu0 %v442
        %v464 = vpop.f32.mrf.mxu0
        %v465 = vadd.f32 0.0, %v464
        %466 = vdwg.mxu0
        %v467 = vsel %vm439, -1e+30, %v465
        %v468 = vsel %vm440, %v467, -inf
        %469 = vmax.xlane.f32.xlu0 %v468
        %v470 = vpop.xlane.xlu0 %469
        %v471 = vsub.f32 %v467, %v470
        %v472 = vmul.f32 %v471, 1.442695
        %v473 = vpow.pop %v472
        %v474 = vsel %vm440, %v473, 0.0
        %475 = vadd.xlane.f32.xlu0 %v474
        %v476 = vpop.xlane.xlu0 %475
        %v477 = vrcp.pop %v476
        %v478 = vmul.f32 %v476, %v477
        %v479 = vsub.f32 1.0, %v478
        %v480 = vmul.f32 %v477, %v479
        %v481 = vadd.f32 %v477, %v480
        %vm482 = vweird.f32 %v476
        %vm483 = vweird.f32 %v477
        %vm484 = vmor %vm482, %vm483
        %v485 = vsel %vm484, %v477, %v481
        %v486 = vand.u32 2147483647, %v476
        %vm487 = vcmp.eq.f32.partialorder %v486, 8.507059e+37
        %v488 = vand.u32 %v476, 2147483648
        %v489 = vor.u32 1.1754944e-38, %v488
        %v490 = vsel %vm487, %v489, %v485
        %v491 = vmul.f32 %v473, %v490
        %v493 = vsel %vm440, %v491, 0
        %495 = vmatpush.msra.mxu0 0.0
        %496 = vmatpush.msra.mxu0 0.0
        %497 = vmatpush.msra.mxu0 0.0
        %498 = vmatpush.msra.mxu0 0.0
        %499 = vmatpush.msra.mxu0 0.0
        %500 = vmatpush.msra.mxu0 0.0
        %501 = vmatpush.msra.mxu0 0.0
        %502 = vmatpush.msra.mxu0 0.0
        %503 = vmatpush.msra.mxu0 0.0
        %504 = vmatpush.msra.mxu0 0.0
        %505 = vmatpush.msra.mxu0 0.0
        %506 = vmatpush.msra.mxu0 0.0
        %507 = vmatpush.msra.mxu0 0.0
        %508 = vmatpush.msra.mxu0 0.0
        %509 = vmatpush.msra.mxu0 0.0
        %510 = vmatpush.msra.mxu0 %v431
        %511 = vmatmul.f32.gmra.mxu0 %v493
        %v512 = vpop.f32.mrf.mxu0
        %v513 = vadd.f32 0.0, %v512
        %514 = vdwg.mxu0
        %515 = vrot.lane.b32.xlu0 %v381, 120
        %v516 = vpop.permute.xlu0 %515
        %517 = vrot.lane.b32.xlu0 %v407, 120
        %v518 = vpop.permute.xlu0 %517
        %v519 = vsel %vm440, %v516, 0
        %v521 = vsel %vm440, %v518, 0
        %523 = vmatpush.xpose.msra.mxu0 0.0
        %524 = vmatpush.xpose.msra.mxu0 0.0
        %525 = vmatpush.xpose.msra.mxu0 0.0
        %526 = vmatpush.xpose.msra.mxu0 0.0
        %527 = vmatpush.xpose.msra.mxu0 0.0
        %528 = vmatpush.xpose.msra.mxu0 0.0
        %529 = vmatpush.xpose.msra.mxu0 0.0
        %530 = vmatpush.xpose.msra.mxu0 0.0
        %531 = vmatpush.xpose.msra.mxu0 0.0
        %532 = vmatpush.xpose.msra.mxu0 0.0
        %533 = vmatpush.xpose.msra.mxu0 0.0
        %534 = vmatpush.xpose.msra.mxu0 0.0
        %535 = vmatpush.xpose.msra.mxu0 0.0
        %536 = vmatpush.xpose.msra.mxu0 0.0
        %537 = vmatpush.xpose.msra.mxu0 0.0
        %538 = vmatpush.xpose.msra.mxu0 %v521
        %539 = vmatmul.f32.gmra.mxu0 %v519
        %v540 = vpop.f32.mrf.mxu0
        %v541 = vadd.f32 0.0, %v540
        %542 = vdwg.mxu0
        %v543 = vsel %vm439, -1e+30, %v541
        %v544 = vsel %vm440, %v543, -inf
        %545 = vmax.xlane.f32.xlu0 %v544
        %v546 = vpop.xlane.xlu0 %545
        %v547 = vsub.f32 %v543, %v546
        %v548 = vmul.f32 %v547, 1.442695
        %v549 = vpow.pop %v548
        %v550 = vsel %vm440, %v549, 0.0
        %551 = vadd.xlane.f32.xlu0 %v550
        %v552 = vpop.xlane.xlu0 %551
        %v553 = vrcp.pop %v552
        %v554 = vmul.f32 %v552, %v553
        %v555 = vsub.f32 1.0, %v554
        %v556 = vmul.f32 %v553, %v555
        %v557 = vadd.f32 %v553, %v556
        %vm558 = vweird.f32 %v552
        %vm559 = vweird.f32 %v553
        %vm560 = vmor %vm558, %vm559
        %v561 = vsel %vm560, %v553, %v557
        %v562 = vand.u32 2147483647, %v552
        %vm563 = vcmp.eq.f32.partialorder %v562, 8.507059e+37
        %v564 = vand.u32 %v552, 2147483648
        %v565 = vor.u32 1.1754944e-38, %v564
        %v566 = vsel %vm563, %v565, %v561
        %v567 = vmul.f32 %v549, %v566
        %569 = vrot.lane.b32.xlu0 %v431, 120
        %v570 = vpop.permute.xlu0 %569
        %v573 = vsel %vm440, %v567, 0
        %575 = vmatpush.msra.mxu0 0.0
        %576 = vmatpush.msra.mxu0 0.0
        %577 = vmatpush.msra.mxu0 0.0
        %578 = vmatpush.msra.mxu0 0.0
        %579 = vmatpush.msra.mxu0 0.0
        %580 = vmatpush.msra.mxu0 0.0
        %581 = vmatpush.msra.mxu0 0.0
        %582 = vmatpush.msra.mxu0 0.0
        %583 = vmatpush.msra.mxu0 0.0
        %584 = vmatpush.msra.mxu0 0.0
        %585 = vmatpush.msra.mxu0 0.0
        %586 = vmatpush.msra.mxu0 0.0
        %587 = vmatpush.msra.mxu0 0.0
        %588 = vmatpush.msra.mxu0 0.0
        %589 = vmatpush.msra.mxu0 0.0
        %590 = vmatpush.msra.mxu0 %v570
        %591 = vmatmul.f32.gmra.mxu0 %v573
        %v592 = vpop.f32.mrf.mxu0
        %v593 = vadd.f32 0.0, %v592
        %594 = vdwg.mxu0
        %595 = vrot.lane.b32.xlu0 %v381, 112
        %v596 = vpop.permute.xlu0 %595
        %597 = vrot.lane.b32.xlu0 %v407, 112
        %v598 = vpop.permute.xlu0 %597
        %v599 = vsel %vm440, %v596, 0
        %v601 = vsel %vm440, %v598, 0
        %603 = vmatpush.xpose.msra.mxu0 0.0
        %604 = vmatpush.xpose.msra.mxu0 0.0
        %605 = vmatpush.xpose.msra.mxu0 0.0
        %606 = vmatpush.xpose.msra.mxu0 0.0
        %607 = vmatpush.xpose.msra.mxu0 0.0
        %608 = vmatpush.xpose.msra.mxu0 0.0
        %609 = vmatpush.xpose.msra.mxu0 0.0
        %610 = vmatpush.xpose.msra.mxu0 0.0
        %611 = vmatpush.xpose.msra.mxu0 0.0
        %612 = vmatpush.xpose.msra.mxu0 0.0
        %613 = vmatpush.xpose.msra.mxu0 0.0
        %614 = vmatpush.xpose.msra.mxu0 0.0
        %615 = vmatpush.xpose.msra.mxu0 0.0
        %616 = vmatpush.xpose.msra.mxu0 0.0
        %617 = vmatpush.xpose.msra.mxu0 0.0
        %618 = vmatpush.xpose.msra.mxu0 %v601
        %619 = vmatmul.f32.gmra.mxu0 %v599
        %v620 = vpop.f32.mrf.mxu0
        %v621 = vadd.f32 0.0, %v620
        %622 = vdwg.mxu0
        %v623 = vsel %vm439, -1e+30, %v621
        %v624 = vsel %vm440, %v623, -inf
        %625 = vmax.xlane.f32.xlu0 %v624
        %v626 = vpop.xlane.xlu0 %625
        %v627 = vsub.f32 %v623, %v626
        %v628 = vmul.f32 %v627, 1.442695
        %v629 = vpow.pop %v628
        %v630 = vsel %vm440, %v629, 0.0
        %631 = vadd.xlane.f32.xlu0 %v630
        %v632 = vpop.xlane.xlu0 %631
        %v633 = vrcp.pop %v632
        %v634 = vmul.f32 %v632, %v633
        %v635 = vsub.f32 1.0, %v634
        %v636 = vmul.f32 %v633, %v635
        %v637 = vadd.f32 %v633, %v636
        %vm638 = vweird.f32 %v632
        %vm639 = vweird.f32 %v633
        %vm640 = vmor %vm638, %vm639
        %v641 = vsel %vm640, %v633, %v637
        %v642 = vand.u32 2147483647, %v632
        %vm643 = vcmp.eq.f32.partialorder %v642, 8.507059e+37
        %v644 = vand.u32 %v632, 2147483648
        %v645 = vor.u32 1.1754944e-38, %v644
        %v646 = vsel %vm643, %v645, %v641
        %v647 = vmul.f32 %v629, %v646
        %648 = vrot.lane.b32.xlu0 %v431, 112
        %v649 = vpop.permute.xlu0 %648
        %v652 = vsel %vm440, %v647, 0
        %654 = vmatpush.msra.mxu0 0.0
        %655 = vmatpush.msra.mxu0 0.0
        %656 = vmatpush.msra.mxu0 0.0
        %657 = vmatpush.msra.mxu0 0.0
        %658 = vmatpush.msra.mxu0 0.0
        %659 = vmatpush.msra.mxu0 0.0
        %660 = vmatpush.msra.mxu0 0.0
        %661 = vmatpush.msra.mxu0 0.0
        %662 = vmatpush.msra.mxu0 0.0
        %663 = vmatpush.msra.mxu0 0.0
        %664 = vmatpush.msra.mxu0 0.0
        %665 = vmatpush.msra.mxu0 0.0
        %666 = vmatpush.msra.mxu0 0.0
        %667 = vmatpush.msra.mxu0 0.0
        %668 = vmatpush.msra.mxu0 0.0
        %669 = vmatpush.msra.mxu0 %v649
        %670 = vmatmul.f32.gmra.mxu0 %v652
        %v671 = vpop.f32.mrf.mxu0
        %v672 = vadd.f32 0.0, %v671
        %673 = vdwg.mxu0
        %674 = vrot.lane.b32.xlu0 %v381, 104
        %v675 = vpop.permute.xlu0 %674
        %676 = vrot.lane.b32.xlu0 %v407, 104
        %v677 = vpop.permute.xlu0 %676
        %v678 = vsel %vm440, %v675, 0
        %v680 = vsel %vm440, %v677, 0
        %682 = vmatpush.xpose.msra.mxu0 0.0
        %683 = vmatpush.xpose.msra.mxu0 0.0
        %684 = vmatpush.xpose.msra.mxu0 0.0
        %685 = vmatpush.xpose.msra.mxu0 0.0
        %686 = vmatpush.xpose.msra.mxu0 0.0
        %687 = vmatpush.xpose.msra.mxu0 0.0
        %688 = vmatpush.xpose.msra.mxu0 0.0
        %689 = vmatpush.xpose.msra.mxu0 0.0
        %690 = vmatpush.xpose.msra.mxu0 0.0
        %691 = vmatpush.xpose.msra.mxu0 0.0
        %692 = vmatpush.xpose.msra.mxu0 0.0
        %693 = vmatpush.xpose.msra.mxu0 0.0
        %694 = vmatpush.xpose.msra.mxu0 0.0
        %695 = vmatpush.xpose.msra.mxu0 0.0
        %696 = vmatpush.xpose.msra.mxu0 0.0
        %697 = vmatpush.xpose.msra.mxu0 %v680
        %698 = vmatmul.f32.gmra.mxu0 %v678
        %v699 = vpop.f32.mrf.mxu0
        %v700 = vadd.f32 0.0, %v699
        %701 = vdwg.mxu0
        %v702 = vsel %vm439, -1e+30, %v700
        %v703 = vsel %vm440, %v702, -inf
        %704 = vmax.xlane.f32.xlu0 %v703
        %v705 = vpop.xlane.xlu0 %704
        %v706 = vsub.f32 %v702, %v705
        %v707 = vmul.f32 %v706, 1.442695
        %v708 = vpow.pop %v707
        %v709 = vsel %vm440, %v708, 0.0
        %710 = vadd.xlane.f32.xlu0 %v709
        %v711 = vpop.xlane.xlu0 %710
        %v712 = vrcp.pop %v711
        %v713 = vmul.f32 %v711, %v712
        %v714 = vsub.f32 1.0, %v713
        %v715 = vmul.f32 %v712, %v714
        %v716 = vadd.f32 %v712, %v715
        %vm717 = vweird.f32 %v711
        %vm718 = vweird.f32 %v712
        %vm719 = vmor %vm717, %vm718
        %v720 = vsel %vm719, %v712, %v716
        %v721 = vand.u32 2147483647, %v711
        %vm722 = vcmp.eq.f32.partialorder %v721, 8.507059e+37
        %v723 = vand.u32 %v711, 2147483648
        %v724 = vor.u32 1.1754944e-38, %v723
        %v725 = vsel %vm722, %v724, %v720
        %v726 = vmul.f32 %v708, %v725
        %727 = vrot.lane.b32.xlu0 %v431, 104
        %v728 = vpop.permute.xlu0 %727
        %v731 = vsel %vm440, %v726, 0
        %733 = vmatpush.msra.mxu0 0.0
        %734 = vmatpush.msra.mxu0 0.0
        %735 = vmatpush.msra.mxu0 0.0
        %736 = vmatpush.msra.mxu0 0.0
        %737 = vmatpush.msra.mxu0 0.0
        %738 = vmatpush.msra.mxu0 0.0
        %739 = vmatpush.msra.mxu0 0.0
        %740 = vmatpush.msra.mxu0 0.0
        %741 = vmatpush.msra.mxu0 0.0
        %742 = vmatpush.msra.mxu0 0.0
        %743 = vmatpush.msra.mxu0 0.0
        %744 = vmatpush.msra.mxu0 0.0
        %745 = vmatpush.msra.mxu0 0.0
        %746 = vmatpush.msra.mxu0 0.0
        %747 = vmatpush.msra.mxu0 0.0
        %748 = vmatpush.msra.mxu0 %v728
        %749 = vmatmul.f32.gmra.mxu0 %v731
        %v750 = vpop.f32.mrf.mxu0
        %v751 = vadd.f32 0.0, %v750
        %752 = vdwg.mxu0
        %754 = vrot.lane.b32.xlu0 %v593, 8
        %v755 = vpop.permute.xlu0 %754
        %758 = vrot.lane.b32.xlu0 %v672, 16
        %v759 = vpop.permute.xlu0 %758
        %762 = vrot.lane.b32.xlu0 %v751, 24
        %v763 = vpop.permute.xlu0 %762
        %v765 = vsel %vm440, %v513, %v755
        %vm766 = vcmask 130048
        %v767 = vsel %vm766, %v765, %v759
        %vm768 = vcmask 195584
        %v769 = vsel %vm768, %v767, %v763
        %v770 = vld [vmem:[#allocation10] sm:$0xff]
        %v771 = vld [vmem:[#allocation10 + $0x8] sm:$0xff]
        %v772 = vld [vmem:[#allocation10 + $0x10] sm:$0xff]
        %v773 = vld [vmem:[#allocation10 + $0x18] sm:$0xff]
        %v774 = vld [vmem:[%s5] sm:$0x1]
        %v776 = vperm.slane %v774, 0
        %v779 = vsel %vm357, %v769, 0
        %781 = vmatpush.msra.mxu0 0.0
        %782 = vmatpush.msra.mxu0 0.0
        %783 = vmatpush.msra.mxu0 0.0
        %784 = vmatpush.msra.mxu0 0.0
        %785 = vmatpush.msra.mxu0 0.0
        %786 = vmatpush.msra.mxu0 0.0
        %787 = vmatpush.msra.mxu0 0.0
        %788 = vmatpush.msra.mxu0 0.0
        %789 = vmatpush.msra.mxu0 0.0
        %790 = vmatpush.msra.mxu0 0.0
        %791 = vmatpush.msra.mxu0 0.0
        %792 = vmatpush.msra.mxu0 0.0
        %793 = vmatpush.msra.mxu0 %v773
        %794 = vmatpush.msra.mxu0 %v772
        %795 = vmatpush.msra.mxu0 %v771
        %796 = vmatpush.msra.mxu0 %v770
        %797 = vmatmul.f32.gmra.mxu0 %v779
        %v798 = vpop.f32.mrf.mxu0
        %v799 = vadd.f32 %v776, %v798
        %800 = vdwg.mxu0
        %801 = vst.msk [vmem:[%s348] sm:$0xff] %vm357, %v799
        %s802 = sand.u32 %s178, 1
        %s803 = scalar_lea.sflag [#allocation4], %s802
        %s804 = sand.u32 %s178, 1
        %s805 = smul.addr %s804, 8
        %s806 = scalar_lea.vmem [#allocation11], %s805
        // Predicated region
        $region65: #{tpu_custom_call.1} parent=43 // pred_check
          %p807 = pneg %p188
        $region66: #{tpu_custom_call.1} parent=43 // pred_check_branch
          %809 = sbr.rel (%p807) target = $region68
        $region67: #{tpu_custom_call.1} parent=43 // pred_region
          %811 = vsyncadd %s803, 0
          %s812 = sadd.s32 %s30, %s29
          %s813 = smul.addr %s812, 8
          %s814 = scalar_lea.hbm %s6, %s813
          %s816 = sshll.u32 %s806, 4
          %s817 = int_to_ptr.vmem [resolvable:$true] %s816
          %s818 = sshll.u32 %s814, 4
          %s819 = int_to_ptr.hbm [resolvable:$true] %s818
          %821 = dma.vmem_to_hbm [thread:$0]  %s817, 128, %s819, %s803
        $region68: #{tpu_custom_call.1} parent=43 // pred_fallthru
          _
      $region44: #{tpu_custom_call.1} parent=5 // pred_fallthru
        _
      %p822 = scmp.le.s32.totalorder 2, %s20
      // Predicated region
      $region69: #{tpu_custom_call.1} parent=5 // pred_check
        %p823 = pneg %p822
      $region70: #{tpu_custom_call.1} parent=5 // pred_check_branch
        %825 = sbr.rel (%p823) target = $region72
      $region71: #{tpu_custom_call.1} parent=5 // pred_region
        %s826 = ssub.s32 %s20, 2
        // Predicated region
        $region73: #{tpu_custom_call.1} parent=71 // pred_check
          %p827 = pneg %p194
        $region74: #{tpu_custom_call.1} parent=71 // pred_check_branch
          %829 = sbr.rel (%p827) target = $region76
        $region75: #{tpu_custom_call.1} parent=71 // pred_region
          %s830 = sand.u32 %s179, 1
          %s831 = scalar_lea.sflag [#allocation4], %s830
          %s832 = sand.u32 %s179, 1
          %s833 = smul.addr %s832, 8
          %s834 = scalar_lea.vmem [#allocation11], %s833
          %836 = dma.done %s831, 128
        $region76: #{tpu_custom_call.1} parent=71 // pred_fallthru
          _
      $region72: #{tpu_custom_call.1} parent=5 // pred_fallthru
        _
    $region6: #{tpu_custom_call.1} parent=1 // loop_footer
      %s24 = sadd.s32 1, %s20
    $region7: #{tpu_custom_call.1} parent=1 // loop_footer_branch
      %19 = sbr.rel target = $region3
    $region8: #{tpu_custom_call.1} parent=1 // loop_exit
      _
    %837 = vsyncpa [#allocation3], 1
    %s838 = scalar_lea.sflag [#allocation3], 1
    %839 = vsyncpa %s838, 1
    %840 = vsyncpa [#allocation6], 1
    %841 = vsyncpa [#allocation9], 1
    %842 = vsyncpa [#allocation4], 1
    %s843 = scalar_lea.sflag [#allocation4], 1
    %844 = vsyncpa %s843, 1

</llo_original>
